<compile_context>
chip_gen: v5e
topology: v5e:2x2
jax: 0.10.0
libtpu: 0.0.40
codegen_flags: <defaults>
</compile_context>

<pallas_src>
import functools

import numpy as np
import jax
import jax.numpy as jnp
from jax.experimental import pallas as pl
from jax.experimental.pallas import tpu as pltpu


def _round_up(x, m):
    return ((x + m - 1) // m) * m


def _vmem_budget_bytes():
    """Generation-aware VMEM working-set budget and scoped-VMEM limit."""
    cap = 64 * 1024 * 1024  # conservative default (v7x-sized physical VMEM)
    try:
        info = pltpu.get_tpu_info()
        for attr in ("vmem_capacity_bytes", "vmem_size_bytes", "vmem_bytes"):
            val = getattr(info, attr, None)
            if val:
                cap = int(val)
                break
    except Exception:
        pass
    # ~32 MiB working set on 128-MiB parts (v5e/v6e), ~24 MiB on 64-MiB v7x.
    budget = 32 * 1024 * 1024 if cap > 64 * 1024 * 1024 else 24 * 1024 * 1024
    budget = min(budget, cap // 2)
    vmem_limit = min(cap - 8 * 1024 * 1024, budget + 16 * 1024 * 1024)
    return budget, int(vmem_limit)


_LANE_TILE_CANDIDATES = (4096, 2048, 1024, 512, 256, 128)


def _choose_tile_lanes(t, k, itemsize, n, budget, other_parallel_steps):
    """Lane-tile width: multiple of 128 (ragged last tile), or full dim if n<128."""
    if n <= 128:
        return n
    # Per-lane working set: double-buffered in + out blocks + padded scratch.
    per_lane = (4 * t + (t + k - 1)) * itemsize
    tile = 128
    for cand in _LANE_TILE_CANDIDATES:
        if cand <= n and per_lane * cand <= budget:
            tile = cand
            break
    # Keep >= 2 parallel grid steps when possible so both v7x TensorCores work.
    while tile > 128 and other_parallel_steps * pl.cdiv(n, tile) < 2:
        tile //= 2
    return tile


def _choose_chunk_rows(t, tile):
    """Time-chunk rows so one chunk's f32 accumulator stays vreg-friendly."""
    c = (64 * 1024) // (4 * max(tile, 128))
    c = max(8, (c // 8) * 8)
    return min(c, max(8, _round_up(t, 8)))


def _smoother_kernel(x_ref, o_ref, xp_ref, *, k, left, t, chunk):
    """Zero-padded 'same' moving average of width k along the time (sublane) axis.

    x_ref, o_ref: (t, n) blocks. xp_ref: (t + k - 1, n) VMEM scratch (input dtype).
    """
    right = (k - 1) - left
    n = xp_ref.shape[-1]

    # In-kernel 'same' zero padding: zero the halo rows, copy the block into
    # the interior.  (No HBM-side jnp.pad pre-pass.)
    if left > 0:
        xp_ref[pl.ds(0, left), :] = jnp.zeros((left, n), xp_ref.dtype)
    if right > 0:
        xp_ref[pl.ds(left + t, right), :] = jnp.zeros((right, n), xp_ref.dtype)
    xp_ref[pl.ds(left, t), :] = x_ref[...]

    inv_k = jnp.float32(1.0 / k)

    def _avg_rows(r0, rows):
        # k shifted VPU adds, f32 accumulation, single cast on the store.
        # TODO(synk): for large filter_size (>~16) switch to an O(log k)
        # doubling scheme / pltpu.roll to stay off the vector-load slot limit.
        acc = xp_ref[pl.ds(r0, rows), :].astype(jnp.float32)
        for j in range(1, k):
            acc = acc + xp_ref[pl.ds(r0 + j, rows), :].astype(jnp.float32)
        o_ref[pl.ds(r0, rows), :] = (acc * inv_k).astype(o_ref.dtype)

    n_full = t // chunk
    tail = t - n_full * chunk
    if n_full > 0:
        if n_full > 4:
            # Many chunks: bound code size with an in-kernel loop.
            def body(i, carry):
                _avg_rows(pl.multiple_of(i * chunk, 8), chunk)
                return carry
            jax.lax.fori_loop(0, n_full, body, 0)
        else:
            for c in range(n_full):
                _avg_rows(c * chunk, chunk)
    if tail > 0:
        _avg_rows(n_full * chunk, tail)


def _smooth_btf(x, filter_size):
    """x: (B, T, F) float array -> zero-padded 'same' moving average over axis 1."""
    B, T, F = (int(d) for d in x.shape)
    k = int(filter_size)
    left = (k - 1) // 2
    itemsize = int(np.dtype(x.dtype).itemsize)

    budget, vmem_limit = _vmem_budget_bytes()
    tile_f = _choose_tile_lanes(T, k, itemsize, F, budget, other_parallel_steps=B)
    chunk = _choose_chunk_rows(T, tile_f)
    grid = (B, pl.cdiv(F, tile_f))
    # TODO(synk): very long sequences (T ~> 10k) would need a halo'd time grid.

    kernel = functools.partial(_smoother_kernel, k=k, left=left, t=T, chunk=chunk)
    return pl.pallas_call(
        kernel,
        out_shape=jax.ShapeDtypeStruct((B, T, F), x.dtype),
        grid=grid,
        in_specs=[pl.BlockSpec((None, T, tile_f), lambda b, f: (b, 0, f))],
        out_specs=pl.BlockSpec((None, T, tile_f), lambda b, f: (b, 0, f)),
        scratch_shapes=[pltpu.VMEM((T + k - 1, tile_f), x.dtype)],
        compiler_params=pltpu.CompilerParams(
            dimension_semantics=("parallel", "parallel"),
            vmem_limit_bytes=vmem_limit),
        cost_estimate=pl.CostEstimate(
            flops=k * B * T * F,
            transcendentals=0,
            bytes_accessed=2 * B * T * F * itemsize),
    )(x)


class Smoother:
    """JAX/Pallas port of lib/models/utils.py::Smoother."""

    def __init__(self, filter_size, temporal_axis=1):
        if temporal_axis != 1:
            raise ValueError(
                "currently supporting only temporal_axis=1 (got {})".format(temporal_axis))
        self.filter_size = int(filter_size)
        self.temporal_axis = temporal_axis
        # The averaging filter ones([1,1,1,k])/k is implicit in the kernel
        # (k shifted adds * 1/k); no weight tensor is shipped through HBM.

    def __call__(self, inp):
        smoothed = {}
        k = self.filter_size
        for name, v in inp.items():
            orig_shape = v.shape
            if v.ndim < 3:
                # TODO(synk): 2-D (B, T) inputs hit torch's unbatched-conv path; unsupported.
                raise ValueError(
                    "Smoother expects ndim >= 3 inputs (got shape {})".format(orig_shape))
            if not jnp.issubdtype(v.dtype, jnp.floating):
                raise ValueError(
                    "Smoother supports floating dtypes only (got {})".format(v.dtype))
            B, T = int(orig_shape[0]), int(orig_shape[1])
            F = int(np.prod(orig_shape[2:]))
            x = v.reshape(B, T, F)                      # view-level reshape (free)
            if F >= 128:
                # Already lane-dense: native (B, T, F) layout, zero relayout passes.
                y = _smooth_btf(x, k)
            else:
                # Narrow features: one transpose to a lane-dense (T, B*F) slab.
                x_tn = jnp.swapaxes(x, 0, 1).reshape(1, T, B * F)
                y_tn = _smooth_btf(x_tn, k)
                y = jnp.swapaxes(y_tn.reshape(T, B, F), 0, 1)
            y = y.reshape(orig_shape)
            assert y.shape == v.shape
            smoothed[name] = y
        return smoothed


def _ref_smooth(x, k):
    """NumPy reference of the torch conv2d 'same' moving average on (B, T, F)."""
    left = (k - 1) // 2
    right = k - 1 - left
    xp = np.pad(x, ((0, 0), (left, right), (0, 0)))
    out = np.zeros_like(x)
    T = x.shape[1]
    for j in range(k):
        out += xp[:, j: j + T, :]
    return out / k


if __name__ == "__main__":
    key = jax.random.PRNGKey(0)
    k1, k2, k3, k4, k5 = jax.random.split(key, 5)

    inputs = {
        "pose3d": jax.random.normal(k1, (2, 16, 8), dtype=jnp.float32),     # narrow (B, T, F)
        "pose2d": jax.random.normal(k2, (2, 16, 3, 4), dtype=jnp.float32),  # narrow (B, T, J, D)
        "root":   jax.random.normal(k3, (2, 24, 6), dtype=jnp.float32),     # different T
        "feats":  jax.random.normal(k4, (2, 16, 160), dtype=jnp.float32),   # wide -> native layout, ragged lane tile
        "traj":   jax.random.normal(k5, (2, 640, 6), dtype=jnp.float32),    # long T -> chunked fori path
    }

    FILTER = 5
    smoother = Smoother(filter_size=FILTER)
    out = smoother(inputs)
    out = jax.tree_util.tree_map(jax.block_until_ready, out)

    # Verify against a NumPy reference of the PyTorch forward.
    for name, v in inputs.items():
        x = np.asarray(v)
        ref = _ref_smooth(x.reshape(x.shape[0], x.shape[1], -1), FILTER).reshape(x.shape)
        got = np.asarray(out[name])
        assert got.shape == x.shape
        np.testing.assert_allclose(got, ref, rtol=1e-5, atol=1e-5)

    # Also check an even filter size (asymmetric 'same' padding: left=1, right=2).
    smoother4 = Smoother(filter_size=4)
    out4 = smoother4({"pose3d": inputs["pose3d"]})
    out4 = jax.tree_util.tree_map(jax.block_until_ready, out4)
    x = np.asarray(inputs["pose3d"])
    ref4 = _ref_smooth(x.reshape(x.shape[0], x.shape[1], -1), 4).reshape(x.shape)
    np.testing.assert_allclose(np.asarray(out4["pose3d"]), ref4, rtol=1e-5, atol=1e-5)

    print("KERNEL_OK")
</pallas_src>

<mosaic_0001>
module attributes {stable_mosaic.version = 11 : i64} {
  func.func @_smoother_kernel(%arg0: i32, %arg1: i32, %arg2: memref<1x16x16xf32, #tpu.memory_space<vmem>>, %arg3: memref<1x16x16xf32, #tpu.memory_space<vmem>>, %arg4: memref<20x16xf32, #tpu.memory_space<vmem>>) attributes {dimension_semantics = [#tpu.dimension_semantics<parallel>, #tpu.dimension_semantics<parallel>], iteration_bounds = array<i64: 1, 1>, scalar_prefetch = 0 : i64, scratch_operands = 1 : i64, tpu.core_type = #tpu.core_type<tc>, window_params = [{transform_indices = @transform_0, window_bounds = array<i64: 1, 16, 16>}, {transform_indices = @transform_1, window_bounds = array<i64: 1, 16, 16>}]} {
    %cst = arith.constant 0.000000e+00 : f32
    %0 = vector.broadcast %cst : f32 to vector<2x16xf32>
    %c0 = arith.constant 0 : index
    %c0_0 = arith.constant 0 : index
    %1 = vector.load %arg4[%c0, %c0_0] : memref<20x16xf32, #tpu.memory_space<vmem>>, vector<2x16xf32>
    tpu.vector_store %arg4[%c0, %c0_0], %0 {strides = array<i32>} : memref<20x16xf32, #tpu.memory_space<vmem>>, vector<2x16xf32>,
    %cst_1 = arith.constant 0.000000e+00 : f32
    %2 = vector.broadcast %cst_1 : f32 to vector<2x16xf32>
    %c18 = arith.constant 18 : index
    %c0_2 = arith.constant 0 : index
    %3 = vector.load %arg4[%c18, %c0_2] : memref<20x16xf32, #tpu.memory_space<vmem>>, vector<2x16xf32>
    tpu.vector_store %arg4[%c18, %c0_2], %2 {strides = array<i32>} : memref<20x16xf32, #tpu.memory_space<vmem>>, vector<2x16xf32>,
    %c0_3 = arith.constant 0 : index
    %c0_4 = arith.constant 0 : index
    %c0_5 = arith.constant 0 : index
    %4 = vector.load %arg2[%c0_3, %c0_4, %c0_5] : memref<1x16x16xf32, #tpu.memory_space<vmem>>, vector<1x16x16xf32>
    %5 = vector.shape_cast %4 : vector<1x16x16xf32> to vector<16x16xf32>
    %c2 = arith.constant 2 : index
    %c0_6 = arith.constant 0 : index
    %6 = vector.load %arg4[%c2, %c0_6] : memref<20x16xf32, #tpu.memory_space<vmem>>, vector<16x16xf32>
    tpu.vector_store %arg4[%c2, %c0_6], %5 {strides = array<i32>} : memref<20x16xf32, #tpu.memory_space<vmem>>, vector<16x16xf32>,
    %c0_7 = arith.constant 0 : index
    %c0_8 = arith.constant 0 : index
    %7 = vector.load %arg4[%c0_7, %c0_8] : memref<20x16xf32, #tpu.memory_space<vmem>>, vector<16x16xf32>
    %c1 = arith.constant 1 : index
    %c0_9 = arith.constant 0 : index
    %8 = vector.load %arg4[%c1, %c0_9] : memref<20x16xf32, #tpu.memory_space<vmem>>, vector<16x16xf32>
    %9 = arith.addf %7, %8 : vector<16x16xf32>
    %c2_10 = arith.constant 2 : index
    %c0_11 = arith.constant 0 : index
    %10 = vector.load %arg4[%c2_10, %c0_11] : memref<20x16xf32, #tpu.memory_space<vmem>>, vector<16x16xf32>
    %11 = arith.addf %9, %10 : vector<16x16xf32>
    %c3 = arith.constant 3 : index
    %c0_12 = arith.constant 0 : index
    %12 = vector.load %arg4[%c3, %c0_12] : memref<20x16xf32, #tpu.memory_space<vmem>>, vector<16x16xf32>
    %13 = arith.addf %11, %12 : vector<16x16xf32>
    %c4 = arith.constant 4 : index
    %c0_13 = arith.constant 0 : index
    %14 = vector.load %arg4[%c4, %c0_13] : memref<20x16xf32, #tpu.memory_space<vmem>>, vector<16x16xf32>
    %15 = arith.addf %13, %14 : vector<16x16xf32>
    %cst_14 = arith.constant 2.000000e-01 : f32
    %16 = vector.broadcast %cst_14 : f32 to vector<16x16xf32>
    %17 = arith.mulf %15, %16 : vector<16x16xf32>
    %c0_15 = arith.constant 0 : index
    %c0_16 = arith.constant 0 : index
    %c0_17 = arith.constant 0 : index
    %18 = vector.load %arg3[%c0_15, %c0_16, %c0_17] : memref<1x16x16xf32, #tpu.memory_space<vmem>>, vector<1x16x16xf32>
    %19 = vector.shape_cast %18 : vector<1x16x16xf32> to vector<16x16xf32>
    %20 = vector.shape_cast %17 : vector<16x16xf32> to vector<1x16x16xf32>
    tpu.vector_store %arg3[%c0_15, %c0_16, %c0_17], %20 {strides = array<i32>} : memref<1x16x16xf32, #tpu.memory_space<vmem>>, vector<1x16x16xf32>,
    return
  }
  func.func @transform_0(%arg0: i32, %arg1: i32) -> (i32, i32, i32) {
    %c0_i32 = arith.constant 0 : i32
    %c0_i32_0 = arith.constant 0 : i32
    return %arg0, %c0_i32, %arg1 : i32, i32, i32
  }
  func.func @transform_1(%arg0: i32, %arg1: i32) -> (i32, i32, i32) {
    %c0_i32 = arith.constant 0 : i32
    %c0_i32_0 = arith.constant 0 : i32
    return %arg0, %c0_i32, %arg1 : i32, i32, i32
  }
}

</mosaic_0001>

<llo_original>
// kernel: tpu_custom_call.1
$region0: #{tpu_custom_call.1}
  #allocation0 [shape = 'u32[]', space=smem, size = 0x4, offset = 0x4, fixed_abs, tag = 'smem constant byte address 0x4 - core index']
  #allocation1 [shape = 'u32[72,128]{1,0:T(1,128)}', space=vmem, size = 0x9000, scoped, tag = 'internal scratch']
  #allocation2 [shape = 'f32[20,16]{1,0:T(8,128)}', space=vmem, size = 0x3000, scoped, tag = 'scratch operand']
  %s0 = inlined_call_operand.hbm [shape: f32[1,16,16], index: 0, kind: input, shape index: {}]
  %s1 = inlined_call_operand.hbm [shape: f32[1,16,16], index: 1, kind: output, shape index: {}]
  %s2 = sld [smem:[#allocation0]]
  $region18: #{tpu_custom_call.1} parent=0
    _
  %s4 = ssub.s32 1, %s2
  %s5 = scalar_select 0, %s4, %s2
  $region1: #{tpu_custom_call.1} parent=0
    #allocation3 [shape = 'u8[8192]{0}', space=vmem, size = 0x2000, scoped, tag = 'input window, operand 0, single buffered']
    #allocation4 [shape = 's32[1]{0}', space=sflag, size = 0x4, scoped, tag = 'scoped memory for tpu_custom_call.1']
    #allocation5 [shape = 's32[1]{0}', space=sflag, size = 0x4, scoped, tag = 'scoped memory for tpu_custom_call.1']
    #allocation6 [shape = 'u8[8192]{0}', space=vmem, size = 0x2000, scoped, tag = 'output window, operand 0, single buffered']
    %6 = vsyncpa [#allocation4], 0
    %7 = vsyncpa [#allocation5], 0
    // Predicated region
    $region2: #{tpu_custom_call.1} parent=1 // pred_check
      _
    $region3: #{tpu_custom_call.1} parent=1 // pred_check_branch
      %9 = sbr.rel (0) target = $region5
    $region4: #{tpu_custom_call.1} parent=1 // pred_region
      %11 = vsyncadd [#allocation4], 0
      %s12 = sshll.u32 %s0, 4
      %s13 = int_to_ptr.hbm [resolvable:$true] %s12
      %s14 = sshll.u32 [#allocation3], 4
      %s15 = int_to_ptr.vmem [resolvable:$true] %s14
      %20 = dma.hbm_to_vmem [thread:$0]  %s13, 256, %s15, [#allocation4], 128, 128, 8
    $region5: #{tpu_custom_call.1} parent=1 // pred_fallthru
      _
    // Predicated region
    $region6: #{tpu_custom_call.1} parent=1 // pred_check
      _
    $region7: #{tpu_custom_call.1} parent=1 // pred_check_branch
      %22 = sbr.rel (0) target = $region9
    $region8: #{tpu_custom_call.1} parent=1 // pred_region
      %24 = dma.done [#allocation4], 256
    $region9: #{tpu_custom_call.1} parent=1 // pred_fallthru
      _
    %vm25 = vcmask 123904
    %26 = vst.msk [vmem:[#allocation2] sm:$0x3] %vm25, 0.0
    %27 = vst.msk [vmem:[#allocation2 + $0x12] sm:$0x3] %vm25, 0.0
    %v28 = vld [vmem:[#allocation3] sm:$0xff]
    %v29 = vld [vmem:[#allocation3 + $0x8] sm:$0xff]
    %vm30 = vcmask 130048
    %31 = vst.msk [vmem:[#allocation2 + $0x2] sm:$0xff] %vm30, %v28
    %32 = vst.msk [vmem:[#allocation2 + $0xa] sm:$0xff] %vm30, %v29
    %v33 = vld [vmem:[#allocation2] sm:$0xff]
    %v34 = vld [vmem:[#allocation2 + $0x8] sm:$0xff]
    %v35 = vld [vmem:[#allocation2 + $0x1] sm:$0xff]
    %v36 = vld [vmem:[#allocation2 + $0x9] sm:$0xff]
    %v37 = vadd.f32 %v33, %v35
    %v38 = vadd.f32 %v34, %v36
    %v39 = vld [vmem:[#allocation2 + $0x2] sm:$0xff]
    %v40 = vld [vmem:[#allocation2 + $0xa] sm:$0xff]
    %v41 = vadd.f32 %v37, %v39
    %v42 = vadd.f32 %v38, %v40
    %v43 = vld [vmem:[#allocation2 + $0x3] sm:$0xff]
    %v44 = vld [vmem:[#allocation2 + $0xb] sm:$0xff]
    %v45 = vadd.f32 %v41, %v43
    %v46 = vadd.f32 %v42, %v44
    %v47 = vld [vmem:[#allocation2 + $0x4] sm:$0xff]
    %v48 = vld [vmem:[#allocation2 + $0xc] sm:$0xff]
    %v49 = vadd.f32 %v45, %v47
    %v50 = vadd.f32 %v46, %v48
    %v51 = vmul.f32 %v49, 0.2
    %v52 = vmul.f32 %v50, 0.2
    %53 = vst.msk [vmem:[#allocation6] sm:$0xff] %vm30, %v51
    %54 = vst.msk [vmem:[#allocation6 + $0x8] sm:$0xff] %vm30, %v52
    // Predicated region
    $region10: #{tpu_custom_call.1} parent=1 // pred_check
      _
    $region11: #{tpu_custom_call.1} parent=1 // pred_check_branch
      %56 = sbr.rel (0) target = $region13
    $region12: #{tpu_custom_call.1} parent=1 // pred_region
      %58 = vsyncadd [#allocation5], 0
      %s59 = sshll.u32 [#allocation6], 4
      %s60 = int_to_ptr.vmem [resolvable:$true] %s59
      %s61 = sshll.u32 %s1, 4
      %s62 = int_to_ptr.hbm [resolvable:$true] %s61
      %67 = dma.vmem_to_hbm [thread:$0]  %s60, 256, %s62, [#allocation5], 128, 128, 8
    $region13: #{tpu_custom_call.1} parent=1 // pred_fallthru
      _
    // Predicated region
    $region14: #{tpu_custom_call.1} parent=1 // pred_check
      _
    $region15: #{tpu_custom_call.1} parent=1 // pred_check_branch
      %69 = sbr.rel (0) target = $region17
    $region16: #{tpu_custom_call.1} parent=1 // pred_region
      %71 = dma.done [#allocation5], 256
    $region17: #{tpu_custom_call.1} parent=1 // pred_fallthru
      _
    %72 = vsyncpa [#allocation4], 1
    %73 = vsyncpa [#allocation5], 1

</llo_original>
